<compile_context>
chip_gen: v7x
topology: tpu7x:2x2x1
jax: 0.10.0
libtpu: 0.0.40
codegen_flags: <defaults>
</compile_context>

<pallas_src>
import functools
import math

import jax
import jax.numpy as jnp
from jax.experimental import pallas as pl
from jax.experimental.pallas import tpu as pltpu


def _round_up(n: int, m: int) -> int:
    return ((n + m - 1) // m) * m


# ---------------------------------------------------------------------------
# Fused Pallas kernel: entire BitNetMLP forward for one batch tile.
# ---------------------------------------------------------------------------
def bitnet_mlp_kernel(x_ref, *refs, num_layers, real_in_dims, eps):
    """x_ref: VMEM (TB, in_pad) bf16 (padded rows/cols are zero).
    refs: [w0, b0, g0, w1, b1, g1, ..., out_ref]
      w_l: (in_pad_l, out_pad_l) int8 pre-binarized +/-1 (0 for zero weights)
      b_l: (1, out_pad_l) f32
      g_l: (1, in_pad_l) f32 RMSNorm gain with alpha=exp(scale) pre-folded.
    out_ref: VMEM (TB, out_pad) f32.
    """
    o_ref = refs[-1]
    layer_refs = refs[:-1]

    inv_sqrt2 = jnp.float32(1.0 / math.sqrt(2.0))
    x = x_ref[...].astype(jnp.float32)

    for l in range(num_layers):
        w_ref = layer_refs[3 * l]
        b_ref = layer_refs[3 * l + 1]
        g_ref = layer_refs[3 * l + 2]

        # --- RMSNorm over the REAL feature width (padded cols are zero, so the
        #     padded sum equals the un-padded sum); gain already holds alpha. --
        inv_n = jnp.float32(1.0 / real_in_dims[l])
        ms = jnp.sum(x * x, axis=-1, keepdims=True) * inv_n
        xn = x * jax.lax.rsqrt(ms + jnp.float32(eps)) * g_ref[...]

        # --- bf16 MXU matmul against pre-binarized int8 weights (upcast to
        #     bf16 just before the dot), f32 accumulation. ---------------------
        acc = jnp.dot(xn.astype(jnp.bfloat16),
                      w_ref[...].astype(jnp.bfloat16),
                      preferred_element_type=jnp.float32)
        y = acc + b_ref[...]

        # --- exact erf-GELU on hidden layers only (f32 element-wise, v5e-safe)
        if l < num_layers - 1:
            y = 0.5 * y * (1.0 + jax.lax.erf(y * inv_sqrt2))

        x = y

    o_ref[...] = x.astype(o_ref.dtype)


# ---------------------------------------------------------------------------
# Parameter construction (deterministic, mirrors BinaryLinear.__init__),
# including one-time weight pre-binarization, alpha-folding and lane padding.
# ---------------------------------------------------------------------------
def init_binary_linear_params(key, in_f, out_f):
    kw, kb = jax.random.split(key)
    # kaiming_uniform_(a=sqrt(5)) on (out_f, in_f)  =>  U(-1/sqrt(in_f), 1/sqrt(in_f))
    bound = 1.0 / math.sqrt(in_f)
    weight = jax.random.uniform(kw, (out_f, in_f), jnp.float32, -bound, bound)
    bias = jax.random.uniform(kb, (out_f,), jnp.float32, -bound, bound)
    scale = math.log(1.0 / math.sqrt(in_f))
    alpha = math.exp(scale)                                   # per-tensor scale

    in_pad = _round_up(in_f, 128)
    out_pad = _round_up(out_f, 128)

    # Pre-binarize once: sign(w) in {-1,0,+1} (matches torch.sign), transposed
    # to (in, out) for x @ W, zero-padded, stored as int8 (half the bytes of
    # bf16; upcast to bf16 inside the kernel right before the MXU).
    w_sign = jnp.sign(weight).T.astype(jnp.int8)              # (in_f, out_f)
    w_sign_t = jnp.zeros((in_pad, out_pad), jnp.int8).at[:in_f, :out_f].set(w_sign)
    bias_pad = jnp.zeros((1, out_pad), jnp.float32).at[0, :out_f].set(bias)
    # RMSNorm gain = ones, with alpha = exp(scale) folded in (padding stays 0).
    gain_alpha_pad = jnp.zeros((1, in_pad), jnp.float32).at[0, :in_f].set(
        jnp.full((in_f,), alpha, jnp.float32))

    return {
        "w_sign_t": w_sign_t,
        "bias_pad": bias_pad,
        "gain_alpha_pad": gain_alpha_pad,
        "scale": scale,
        "in_features": in_f,
        "out_features": out_f,
    }


def init_bitnet_mlp_params(key, in_features, hidden_features, num_classes, depth):
    params = []
    keys = jax.random.split(key, depth + 1)
    for i in range(depth):
        in_f = in_features if i == 0 else hidden_features
        params.append(init_binary_linear_params(keys[i], in_f, hidden_features))
    params.append(init_binary_linear_params(keys[depth], hidden_features, num_classes))
    return params


# ---------------------------------------------------------------------------
# Forward wrapper: one fused pallas_call, gridded over batch tiles.
# ---------------------------------------------------------------------------
def bitnet_mlp_forward(params, x_nchw, *, max_batch_tile=256):
    """x_nchw: (B, C, H, W) -> logits (B, num_classes). Dropout is identity (eval)."""
    B = x_nchw.shape[0]
    x = x_nchw.reshape(B, -1).astype(jnp.float32)             # nn.Flatten on NCHW
    in_features = x.shape[1]

    num_layers = len(params)
    in_pad = _round_up(in_features, 128)

    # Batch tile: multiple of 16 (bf16 MXU LHS packing), bounded for VMEM.
    TB = min(_round_up(B, 16), max_batch_tile)
    B_pad = _round_up(B, TB)
    num_tiles = B_pad // TB

    # Zero-pad activations; padded rows/cols stay exactly zero through the net.
    # Input DMA'd in bf16 (halves the largest activation transfer); all stats f32.
    x_pad = jnp.zeros((B_pad, in_pad), jnp.bfloat16).at[:B, :in_features].set(
        x.astype(jnp.bfloat16))

    flat_inputs = []
    in_specs = [
        pl.BlockSpec((TB, in_pad), lambda i: (i, 0)),          # x tile, pipelined
    ]
    real_in_dims = []
    weight_bytes = 0
    for p in params:
        flat_inputs += [p["w_sign_t"], p["bias_pad"], p["gain_alpha_pad"]]
        # Constant index_maps: whole array is one block, fetched once, then
        # VMEM-resident across all grid steps.
        in_specs += [
            pl.BlockSpec(p["w_sign_t"].shape, lambda i: (0, 0)),
            pl.BlockSpec(p["bias_pad"].shape, lambda i: (0, 0)),
            pl.BlockSpec(p["gain_alpha_pad"].shape, lambda i: (0, 0)),
        ]
        real_in_dims.append(p["in_features"])
        weight_bytes += (p["w_sign_t"].size * 1 + p["bias_pad"].size * 4
                         + p["gain_alpha_pad"].size * 4)

    out_pad = params[-1]["w_sign_t"].shape[1]
    num_classes = params[-1]["out_features"]

    # VMEM budget: weights (resident) + double-buffered x/out blocks + f32
    # inter-layer activation working set, with headroom; clamp to v7x's 64 MiB.
    max_feat_pad = max([in_pad] + [p["w_sign_t"].shape[1] for p in params])
    vmem_est = (weight_bytes
                + 2 * TB * in_pad * 2          # bf16 x block, double-buffered
                + 2 * TB * out_pad * 4         # f32 out block, double-buffered
                + 4 * TB * max_feat_pad * 4)   # f32 working activations
    vmem_limit = int(min(max(2 * vmem_est + (8 << 20), 32 << 20), 64 << 20))

    kernel = functools.partial(
        bitnet_mlp_kernel,
        num_layers=num_layers,
        real_in_dims=tuple(real_in_dims),
        eps=1e-8,
    )

    out_padded = pl.pallas_call(
        kernel,
        out_shape=jax.ShapeDtypeStruct((B_pad, out_pad), jnp.float32),
        grid=(num_tiles,),
        in_specs=in_specs,
        out_specs=pl.BlockSpec((TB, out_pad), lambda i: (i, 0)),
        compiler_params=pltpu.CompilerParams(
            dimension_semantics=("parallel",),     # megacore sharding on v7x
            vmem_limit_bytes=vmem_limit,
        ),
    )(x_pad, *flat_inputs)

    return out_padded[:B, :num_classes]


# ---------------------------------------------------------------------------
if __name__ == "__main__":
    # Small synthetic config consistent with the module's forward
    # (flatten of an NCHW image -> MLP): C=3, H=W=4 -> in_features=48.
    B, C, H, W = 2, 3, 4, 4
    in_features = C * H * W                    # 48
    hidden_features = 32
    num_classes = 10
    depth = 4

    key = jax.random.PRNGKey(0)
    k_x, k_p = jax.random.split(key)
    x = jax.random.normal(k_x, (B, C, H, W), jnp.float32)
    params = init_bitnet_mlp_params(k_p, in_features, hidden_features,
                                    num_classes, depth)

    logits = bitnet_mlp_forward(params, x)
    jax.block_until_ready(logits)
    assert logits.shape == (B, num_classes)
    print("KERNEL_OK")
</pallas_src>

<mosaic_0001>
module attributes {stable_mosaic.version = 11 : i64} {
  func.func @bitnet_mlp_kernel(%arg0: i32, %arg1: memref<16x128xbf16, #tpu.memory_space<vmem>>, %arg2: memref<128x128xi8, #tpu.memory_space<vmem>>, %arg3: memref<1x128xf32, #tpu.memory_space<vmem>>, %arg4: memref<1x128xf32, #tpu.memory_space<vmem>>, %arg5: memref<128x128xi8, #tpu.memory_space<vmem>>, %arg6: memref<1x128xf32, #tpu.memory_space<vmem>>, %arg7: memref<1x128xf32, #tpu.memory_space<vmem>>, %arg8: memref<128x128xi8, #tpu.memory_space<vmem>>, %arg9: memref<1x128xf32, #tpu.memory_space<vmem>>, %arg10: memref<1x128xf32, #tpu.memory_space<vmem>>, %arg11: memref<128x128xi8, #tpu.memory_space<vmem>>, %arg12: memref<1x128xf32, #tpu.memory_space<vmem>>, %arg13: memref<1x128xf32, #tpu.memory_space<vmem>>, %arg14: memref<128x128xi8, #tpu.memory_space<vmem>>, %arg15: memref<1x128xf32, #tpu.memory_space<vmem>>, %arg16: memref<1x128xf32, #tpu.memory_space<vmem>>, %arg17: memref<16x128xf32, #tpu.memory_space<vmem>>) attributes {dimension_semantics = [#tpu.dimension_semantics<parallel>], iteration_bounds = array<i64: 1>, scalar_prefetch = 0 : i64, scratch_operands = 0 : i64, tpu.core_type = #tpu.core_type<tc>, window_params = [{transform_indices = @transform_0, window_bounds = array<i64: 16, 128>}, {pipeline_mode = #tpu.pipeline_mode<synchronous>, transform_indices = @transform_1, window_bounds = array<i64: 128, 128>}, {pipeline_mode = #tpu.pipeline_mode<synchronous>, transform_indices = @transform_2, window_bounds = array<i64: 1, 128>}, {pipeline_mode = #tpu.pipeline_mode<synchronous>, transform_indices = @transform_3, window_bounds = array<i64: 1, 128>}, {pipeline_mode = #tpu.pipeline_mode<synchronous>, transform_indices = @transform_4, window_bounds = array<i64: 128, 128>}, {pipeline_mode = #tpu.pipeline_mode<synchronous>, transform_indices = @transform_5, window_bounds = array<i64: 1, 128>}, {pipeline_mode = #tpu.pipeline_mode<synchronous>, transform_indices = @transform_6, window_bounds = array<i64: 1, 128>}, {pipeline_mode = #tpu.pipeline_mode<synchronous>, transform_indices = @transform_7, window_bounds = array<i64: 128, 128>}, {pipeline_mode = #tpu.pipeline_mode<synchronous>, transform_indices = @transform_8, window_bounds = array<i64: 1, 128>}, {pipeline_mode = #tpu.pipeline_mode<synchronous>, transform_indices = @transform_9, window_bounds = array<i64: 1, 128>}, {pipeline_mode = #tpu.pipeline_mode<synchronous>, transform_indices = @transform_10, window_bounds = array<i64: 128, 128>}, {pipeline_mode = #tpu.pipeline_mode<synchronous>, transform_indices = @transform_11, window_bounds = array<i64: 1, 128>}, {pipeline_mode = #tpu.pipeline_mode<synchronous>, transform_indices = @transform_12, window_bounds = array<i64: 1, 128>}, {pipeline_mode = #tpu.pipeline_mode<synchronous>, transform_indices = @transform_13, window_bounds = array<i64: 128, 128>}, {pipeline_mode = #tpu.pipeline_mode<synchronous>, transform_indices = @transform_14, window_bounds = array<i64: 1, 128>}, {pipeline_mode = #tpu.pipeline_mode<synchronous>, transform_indices = @transform_15, window_bounds = array<i64: 1, 128>}, {transform_indices = @transform_16, window_bounds = array<i64: 16, 128>}]} {
    %c0 = arith.constant 0 : index
    %c0_0 = arith.constant 0 : index
    %0 = vector.load %arg1[%c0, %c0_0] : memref<16x128xbf16, #tpu.memory_space<vmem>>, vector<16x128xbf16>
    %1 = arith.extf %0 : vector<16x128xbf16> to vector<16x128xf32>
    %2 = arith.mulf %1, %1 : vector<16x128xf32>
    %cst = arith.constant dense<0.000000e+00> : vector<16xf32>
    %3 = vector.multi_reduction <add>, %2, %cst [1] : vector<16x128xf32> to vector<16xf32>
    %4 = vector.shape_cast %3 : vector<16xf32> to vector<16x1xf32>
    %cst_1 = arith.constant 0.020833334 : f32
    %5 = vector.broadcast %cst_1 : f32 to vector<16x1xf32>
    %6 = arith.mulf %4, %5 : vector<16x1xf32>
    %cst_2 = arith.constant 9.99999993E-9 : f32
    %7 = vector.broadcast %cst_2 : f32 to vector<16x1xf32>
    %8 = arith.addf %6, %7 : vector<16x1xf32>
    %9 = math.rsqrt %8 : vector<16x1xf32>
    %10 = vector.broadcast %9 : vector<16x1xf32> to vector<16x128xf32>
    %11 = arith.mulf %1, %10 : vector<16x128xf32>
    %c0_3 = arith.constant 0 : index
    %c0_4 = arith.constant 0 : index
    %12 = vector.load %arg4[%c0_3, %c0_4] : memref<1x128xf32, #tpu.memory_space<vmem>>, vector<1x128xf32>
    %13 = vector.broadcast %12 : vector<1x128xf32> to vector<16x128xf32>
    %14 = arith.mulf %11, %13 : vector<16x128xf32>
    %15 = arith.truncf %14 : vector<16x128xf32> to vector<16x128xbf16>
    %c0_5 = arith.constant 0 : index
    %c0_6 = arith.constant 0 : index
    %16 = vector.load %arg2[%c0_5, %c0_6] : memref<128x128xi8, #tpu.memory_space<vmem>>, vector<128x128xi8>
    %17 = arith.sitofp %16 : vector<128x128xi8> to vector<128x128xbf16>
    %cst_7 = arith.constant dense<0.000000e+00> : vector<16x128xf32>
    %18 = tpu.matmul %15, %17, %cst_7 {dimension_numbers = #tpu.dot_dimension_numbers<[1], [0], [0], [1], [0, 0, 1, 1], [], []>} : vector<16x128xbf16>, vector<128x128xbf16>, vector<16x128xf32> -> vector<16x128xf32>
    %c0_8 = arith.constant 0 : index
    %c0_9 = arith.constant 0 : index
    %19 = vector.load %arg3[%c0_8, %c0_9] : memref<1x128xf32, #tpu.memory_space<vmem>>, vector<1x128xf32>
    %20 = vector.broadcast %19 : vector<1x128xf32> to vector<16x128xf32>
    %21 = arith.addf %18, %20 : vector<16x128xf32>
    %cst_10 = arith.constant 5.000000e-01 : f32
    %22 = vector.broadcast %cst_10 : f32 to vector<16x128xf32>
    %23 = arith.mulf %22, %21 : vector<16x128xf32>
    %cst_11 = arith.constant 0.707106769 : f32
    %24 = vector.broadcast %cst_11 : f32 to vector<16x128xf32>
    %25 = arith.mulf %21, %24 : vector<16x128xf32>
    %26 = math.erf %25 : vector<16x128xf32>
    %cst_12 = arith.constant 1.000000e+00 : f32
    %27 = vector.broadcast %cst_12 : f32 to vector<16x128xf32>
    %28 = arith.addf %27, %26 : vector<16x128xf32>
    %29 = arith.mulf %23, %28 : vector<16x128xf32>
    %30 = arith.mulf %29, %29 : vector<16x128xf32>
    %cst_13 = arith.constant dense<0.000000e+00> : vector<16xf32>
    %31 = vector.multi_reduction <add>, %30, %cst_13 [1] : vector<16x128xf32> to vector<16xf32>
    %32 = vector.shape_cast %31 : vector<16xf32> to vector<16x1xf32>
    %cst_14 = arith.constant 3.125000e-02 : f32
    %33 = vector.broadcast %cst_14 : f32 to vector<16x1xf32>
    %34 = arith.mulf %32, %33 : vector<16x1xf32>
    %cst_15 = arith.constant 9.99999993E-9 : f32
    %35 = vector.broadcast %cst_15 : f32 to vector<16x1xf32>
    %36 = arith.addf %34, %35 : vector<16x1xf32>
    %37 = math.rsqrt %36 : vector<16x1xf32>
    %38 = vector.broadcast %37 : vector<16x1xf32> to vector<16x128xf32>
    %39 = arith.mulf %29, %38 : vector<16x128xf32>
    %c0_16 = arith.constant 0 : index
    %c0_17 = arith.constant 0 : index
    %40 = vector.load %arg7[%c0_16, %c0_17] : memref<1x128xf32, #tpu.memory_space<vmem>>, vector<1x128xf32>
    %41 = vector.broadcast %40 : vector<1x128xf32> to vector<16x128xf32>
    %42 = arith.mulf %39, %41 : vector<16x128xf32>
    %43 = arith.truncf %42 : vector<16x128xf32> to vector<16x128xbf16>
    %c0_18 = arith.constant 0 : index
    %c0_19 = arith.constant 0 : index
    %44 = vector.load %arg5[%c0_18, %c0_19] : memref<128x128xi8, #tpu.memory_space<vmem>>, vector<128x128xi8>
    %45 = arith.sitofp %44 : vector<128x128xi8> to vector<128x128xbf16>
    %cst_20 = arith.constant dense<0.000000e+00> : vector<16x128xf32>
    %46 = tpu.matmul %43, %45, %cst_20 {dimension_numbers = #tpu.dot_dimension_numbers<[1], [0], [0], [1], [0, 0, 1, 1], [], []>} : vector<16x128xbf16>, vector<128x128xbf16>, vector<16x128xf32> -> vector<16x128xf32>
    %c0_21 = arith.constant 0 : index
    %c0_22 = arith.constant 0 : index
    %47 = vector.load %arg6[%c0_21, %c0_22] : memref<1x128xf32, #tpu.memory_space<vmem>>, vector<1x128xf32>
    %48 = vector.broadcast %47 : vector<1x128xf32> to vector<16x128xf32>
    %49 = arith.addf %46, %48 : vector<16x128xf32>
    %cst_23 = arith.constant 5.000000e-01 : f32
    %50 = vector.broadcast %cst_23 : f32 to vector<16x128xf32>
    %51 = arith.mulf %50, %49 : vector<16x128xf32>
    %cst_24 = arith.constant 0.707106769 : f32
    %52 = vector.broadcast %cst_24 : f32 to vector<16x128xf32>
    %53 = arith.mulf %49, %52 : vector<16x128xf32>
    %54 = math.erf %53 : vector<16x128xf32>
    %cst_25 = arith.constant 1.000000e+00 : f32
    %55 = vector.broadcast %cst_25 : f32 to vector<16x128xf32>
    %56 = arith.addf %55, %54 : vector<16x128xf32>
    %57 = arith.mulf %51, %56 : vector<16x128xf32>
    %58 = arith.mulf %57, %57 : vector<16x128xf32>
    %cst_26 = arith.constant dense<0.000000e+00> : vector<16xf32>
    %59 = vector.multi_reduction <add>, %58, %cst_26 [1] : vector<16x128xf32> to vector<16xf32>
    %60 = vector.shape_cast %59 : vector<16xf32> to vector<16x1xf32>
    %cst_27 = arith.constant 3.125000e-02 : f32
    %61 = vector.broadcast %cst_27 : f32 to vector<16x1xf32>
    %62 = arith.mulf %60, %61 : vector<16x1xf32>
    %cst_28 = arith.constant 9.99999993E-9 : f32
    %63 = vector.broadcast %cst_28 : f32 to vector<16x1xf32>
    %64 = arith.addf %62, %63 : vector<16x1xf32>
    %65 = math.rsqrt %64 : vector<16x1xf32>
    %66 = vector.broadcast %65 : vector<16x1xf32> to vector<16x128xf32>
    %67 = arith.mulf %57, %66 : vector<16x128xf32>
    %c0_29 = arith.constant 0 : index
    %c0_30 = arith.constant 0 : index
    %68 = vector.load %arg10[%c0_29, %c0_30] : memref<1x128xf32, #tpu.memory_space<vmem>>, vector<1x128xf32>
    %69 = vector.broadcast %68 : vector<1x128xf32> to vector<16x128xf32>
    %70 = arith.mulf %67, %69 : vector<16x128xf32>
    %71 = arith.truncf %70 : vector<16x128xf32> to vector<16x128xbf16>
    %c0_31 = arith.constant 0 : index
    %c0_32 = arith.constant 0 : index
    %72 = vector.load %arg8[%c0_31, %c0_32] : memref<128x128xi8, #tpu.memory_space<vmem>>, vector<128x128xi8>
    %73 = arith.sitofp %72 : vector<128x128xi8> to vector<128x128xbf16>
    %cst_33 = arith.constant dense<0.000000e+00> : vector<16x128xf32>
    %74 = tpu.matmul %71, %73, %cst_33 {dimension_numbers = #tpu.dot_dimension_numbers<[1], [0], [0], [1], [0, 0, 1, 1], [], []>} : vector<16x128xbf16>, vector<128x128xbf16>, vector<16x128xf32> -> vector<16x128xf32>
    %c0_34 = arith.constant 0 : index
    %c0_35 = arith.constant 0 : index
    %75 = vector.load %arg9[%c0_34, %c0_35] : memref<1x128xf32, #tpu.memory_space<vmem>>, vector<1x128xf32>
    %76 = vector.broadcast %75 : vector<1x128xf32> to vector<16x128xf32>
    %77 = arith.addf %74, %76 : vector<16x128xf32>
    %cst_36 = arith.constant 5.000000e-01 : f32
    %78 = vector.broadcast %cst_36 : f32 to vector<16x128xf32>
    %79 = arith.mulf %78, %77 : vector<16x128xf32>
    %cst_37 = arith.constant 0.707106769 : f32
    %80 = vector.broadcast %cst_37 : f32 to vector<16x128xf32>
    %81 = arith.mulf %77, %80 : vector<16x128xf32>
    %82 = math.erf %81 : vector<16x128xf32>
    %cst_38 = arith.constant 1.000000e+00 : f32
    %83 = vector.broadcast %cst_38 : f32 to vector<16x128xf32>
    %84 = arith.addf %83, %82 : vector<16x128xf32>
    %85 = arith.mulf %79, %84 : vector<16x128xf32>
    %86 = arith.mulf %85, %85 : vector<16x128xf32>
    %cst_39 = arith.constant dense<0.000000e+00> : vector<16xf32>
    %87 = vector.multi_reduction <add>, %86, %cst_39 [1] : vector<16x128xf32> to vector<16xf32>
    %88 = vector.shape_cast %87 : vector<16xf32> to vector<16x1xf32>
    %cst_40 = arith.constant 3.125000e-02 : f32
    %89 = vector.broadcast %cst_40 : f32 to vector<16x1xf32>
    %90 = arith.mulf %88, %89 : vector<16x1xf32>
    %cst_41 = arith.constant 9.99999993E-9 : f32
    %91 = vector.broadcast %cst_41 : f32 to vector<16x1xf32>
    %92 = arith.addf %90, %91 : vector<16x1xf32>
    %93 = math.rsqrt %92 : vector<16x1xf32>
    %94 = vector.broadcast %93 : vector<16x1xf32> to vector<16x128xf32>
    %95 = arith.mulf %85, %94 : vector<16x128xf32>
    %c0_42 = arith.constant 0 : index
    %c0_43 = arith.constant 0 : index
    %96 = vector.load %arg13[%c0_42, %c0_43] : memref<1x128xf32, #tpu.memory_space<vmem>>, vector<1x128xf32>
    %97 = vector.broadcast %96 : vector<1x128xf32> to vector<16x128xf32>
    %98 = arith.mulf %95, %97 : vector<16x128xf32>
    %99 = arith.truncf %98 : vector<16x128xf32> to vector<16x128xbf16>
    %c0_44 = arith.constant 0 : index
    %c0_45 = arith.constant 0 : index
    %100 = vector.load %arg11[%c0_44, %c0_45] : memref<128x128xi8, #tpu.memory_space<vmem>>, vector<128x128xi8>
    %101 = arith.sitofp %100 : vector<128x128xi8> to vector<128x128xbf16>
    %cst_46 = arith.constant dense<0.000000e+00> : vector<16x128xf32>
    %102 = tpu.matmul %99, %101, %cst_46 {dimension_numbers = #tpu.dot_dimension_numbers<[1], [0], [0], [1], [0, 0, 1, 1], [], []>} : vector<16x128xbf16>, vector<128x128xbf16>, vector<16x128xf32> -> vector<16x128xf32>
    %c0_47 = arith.constant 0 : index
    %c0_48 = arith.constant 0 : index
    %103 = vector.load %arg12[%c0_47, %c0_48] : memref<1x128xf32, #tpu.memory_space<vmem>>, vector<1x128xf32>
    %104 = vector.broadcast %103 : vector<1x128xf32> to vector<16x128xf32>
    %105 = arith.addf %102, %104 : vector<16x128xf32>
    %cst_49 = arith.constant 5.000000e-01 : f32
    %106 = vector.broadcast %cst_49 : f32 to vector<16x128xf32>
    %107 = arith.mulf %106, %105 : vector<16x128xf32>
    %cst_50 = arith.constant 0.707106769 : f32
    %108 = vector.broadcast %cst_50 : f32 to vector<16x128xf32>
    %109 = arith.mulf %105, %108 : vector<16x128xf32>
    %110 = math.erf %109 : vector<16x128xf32>
    %cst_51 = arith.constant 1.000000e+00 : f32
    %111 = vector.broadcast %cst_51 : f32 to vector<16x128xf32>
    %112 = arith.addf %111, %110 : vector<16x128xf32>
    %113 = arith.mulf %107, %112 : vector<16x128xf32>
    %114 = arith.mulf %113, %113 : vector<16x128xf32>
    %cst_52 = arith.constant dense<0.000000e+00> : vector<16xf32>
    %115 = vector.multi_reduction <add>, %114, %cst_52 [1] : vector<16x128xf32> to vector<16xf32>
    %116 = vector.shape_cast %115 : vector<16xf32> to vector<16x1xf32>
    %cst_53 = arith.constant 3.125000e-02 : f32
    %117 = vector.broadcast %cst_53 : f32 to vector<16x1xf32>
    %118 = arith.mulf %116, %117 : vector<16x1xf32>
    %cst_54 = arith.constant 9.99999993E-9 : f32
    %119 = vector.broadcast %cst_54 : f32 to vector<16x1xf32>
    %120 = arith.addf %118, %119 : vector<16x1xf32>
    %121 = math.rsqrt %120 : vector<16x1xf32>
    %122 = vector.broadcast %121 : vector<16x1xf32> to vector<16x128xf32>
    %123 = arith.mulf %113, %122 : vector<16x128xf32>
    %c0_55 = arith.constant 0 : index
    %c0_56 = arith.constant 0 : index
    %124 = vector.load %arg16[%c0_55, %c0_56] : memref<1x128xf32, #tpu.memory_space<vmem>>, vector<1x128xf32>
    %125 = vector.broadcast %124 : vector<1x128xf32> to vector<16x128xf32>
    %126 = arith.mulf %123, %125 : vector<16x128xf32>
    %127 = arith.truncf %126 : vector<16x128xf32> to vector<16x128xbf16>
    %c0_57 = arith.constant 0 : index
    %c0_58 = arith.constant 0 : index
    %128 = vector.load %arg14[%c0_57, %c0_58] : memref<128x128xi8, #tpu.memory_space<vmem>>, vector<128x128xi8>
    %129 = arith.sitofp %128 : vector<128x128xi8> to vector<128x128xbf16>
    %cst_59 = arith.constant dense<0.000000e+00> : vector<16x128xf32>
    %130 = tpu.matmul %127, %129, %cst_59 {dimension_numbers = #tpu.dot_dimension_numbers<[1], [0], [0], [1], [0, 0, 1, 1], [], []>} : vector<16x128xbf16>, vector<128x128xbf16>, vector<16x128xf32> -> vector<16x128xf32>
    %c0_60 = arith.constant 0 : index
    %c0_61 = arith.constant 0 : index
    %131 = vector.load %arg15[%c0_60, %c0_61] : memref<1x128xf32, #tpu.memory_space<vmem>>, vector<1x128xf32>
    %132 = vector.broadcast %131 : vector<1x128xf32> to vector<16x128xf32>
    %133 = arith.addf %130, %132 : vector<16x128xf32>
    %c0_62 = arith.constant 0 : index
    %c0_63 = arith.constant 0 : index
    %134 = vector.load %arg17[%c0_62, %c0_63] : memref<16x128xf32, #tpu.memory_space<vmem>>, vector<16x128xf32>
    tpu.vector_store %arg17[%c0_62, %c0_63], %133 {strides = array<i32>} : memref<16x128xf32, #tpu.memory_space<vmem>>, vector<16x128xf32>,
    return
  }
  func.func @transform_0(%arg0: i32) -> (i32, i32) {
    %c0_i32 = arith.constant 0 : i32
    %c0_i32_0 = arith.constant 0 : i32
    return %arg0, %c0_i32 : i32, i32
  }
  func.func @transform_1(%arg0: i32) -> (i32, i32) {
    %c0_i32 = arith.constant 0 : i32
    %c0_i32_0 = arith.constant 0 : i32
    %c0_i32_1 = arith.constant 0 : i32
    return %c0_i32, %c0_i32_0 : i32, i32
  }
  func.func @transform_2(%arg0: i32) -> (i32, i32) {
    %c0_i32 = arith.constant 0 : i32
    %c0_i32_0 = arith.constant 0 : i32
    %c0_i32_1 = arith.constant 0 : i32
    return %c0_i32, %c0_i32_0 : i32, i32
  }
  func.func @transform_3(%arg0: i32) -> (i32, i32) {
    %c0_i32 = arith.constant 0 : i32
    %c0_i32_0 = arith.constant 0 : i32
    %c0_i32_1 = arith.constant 0 : i32
    return %c0_i32, %c0_i32_0 : i32, i32
  }
  func.func @transform_4(%arg0: i32) -> (i32, i32) {
    %c0_i32 = arith.constant 0 : i32
    %c0_i32_0 = arith.constant 0 : i32
    %c0_i32_1 = arith.constant 0 : i32
    return %c0_i32, %c0_i32_0 : i32, i32
  }
  func.func @transform_5(%arg0: i32) -> (i32, i32) {
    %c0_i32 = arith.constant 0 : i32
    %c0_i32_0 = arith.constant 0 : i32
    %c0_i32_1 = arith.constant 0 : i32
    return %c0_i32, %c0_i32_0 : i32, i32
  }
  func.func @transform_6(%arg0: i32) -> (i32, i32) {
    %c0_i32 = arith.constant 0 : i32
    %c0_i32_0 = arith.constant 0 : i32
    %c0_i32_1 = arith.constant 0 : i32
    return %c0_i32, %c0_i32_0 : i32, i32
  }
  func.func @transform_7(%arg0: i32) -> (i32, i32) {
    %c0_i32 = arith.constant 0 : i32
    %c0_i32_0 = arith.constant 0 : i32
    %c0_i32_1 = arith.constant 0 : i32
    return %c0_i32, %c0_i32_0 : i32, i32
  }
  func.func @transform_8(%arg0: i32) -> (i32, i32) {
    %c0_i32 = arith.constant 0 : i32
    %c0_i32_0 = arith.constant 0 : i32
    %c0_i32_1 = arith.constant 0 : i32
    return %c0_i32, %c0_i32_0 : i32, i32
  }
  func.func @transform_9(%arg0: i32) -> (i32, i32) {
    %c0_i32 = arith.constant 0 : i32
    %c0_i32_0 = arith.constant 0 : i32
    %c0_i32_1 = arith.constant 0 : i32
    return %c0_i32, %c0_i32_0 : i32, i32
  }
  func.func @transform_10(%arg0: i32) -> (i32, i32) {
    %c0_i32 = arith.constant 0 : i32
    %c0_i32_0 = arith.constant 0 : i32
    %c0_i32_1 = arith.constant 0 : i32
    return %c0_i32, %c0_i32_0 : i32, i32
  }
  func.func @transform_11(%arg0: i32) -> (i32, i32) {
    %c0_i32 = arith.constant 0 : i32
    %c0_i32_0 = arith.constant 0 : i32
    %c0_i32_1 = arith.constant 0 : i32
    return %c0_i32, %c0_i32_0 : i32, i32
  }
  func.func @transform_12(%arg0: i32) -> (i32, i32) {
    %c0_i32 = arith.constant 0 : i32
    %c0_i32_0 = arith.constant 0 : i32
    %c0_i32_1 = arith.constant 0 : i32
    return %c0_i32, %c0_i32_0 : i32, i32
  }
  func.func @transform_13(%arg0: i32) -> (i32, i32) {
    %c0_i32 = arith.constant 0 : i32
    %c0_i32_0 = arith.constant 0 : i32
    %c0_i32_1 = arith.constant 0 : i32
    return %c0_i32, %c0_i32_0 : i32, i32
  }
  func.func @transform_14(%arg0: i32) -> (i32, i32) {
    %c0_i32 = arith.constant 0 : i32
    %c0_i32_0 = arith.constant 0 : i32
    %c0_i32_1 = arith.constant 0 : i32
    return %c0_i32, %c0_i32_0 : i32, i32
  }
  func.func @transform_15(%arg0: i32) -> (i32, i32) {
    %c0_i32 = arith.constant 0 : i32
    %c0_i32_0 = arith.constant 0 : i32
    %c0_i32_1 = arith.constant 0 : i32
    return %c0_i32, %c0_i32_0 : i32, i32
  }
  func.func @transform_16(%arg0: i32) -> (i32, i32) {
    %c0_i32 = arith.constant 0 : i32
    %c0_i32_0 = arith.constant 0 : i32
    return %arg0, %c0_i32 : i32, i32
  }
}

</mosaic_0001>

<llo_original>
// kernel: tpu_custom_call.1
$region0: #{tpu_custom_call.1}
  #allocation0 [shape = 'u32[]', space=smem, size = 0x4, offset = 0x4, fixed_abs, tag = 'smem constant byte address 0x4 - core index']
  #allocation1 [shape = 'u32[144,128]{1,0:T(1,128)}', space=vmem, size = 0x12000, scoped, tag = 'internal scratch']
  %s0 = inlined_call_operand.hbm [shape: bf16[16,128], index: 0, kind: input, shape index: {}]
  %s1 = inlined_call_operand.hbm [shape: s8[128,128], index: 1, kind: input, shape index: {}]
  %s2 = inlined_call_operand.vmem [shape: f32[1,128], index: 2, kind: input, shape index: {}]
  %s3 = inlined_call_operand.vmem [shape: f32[1,128], index: 3, kind: input, shape index: {}]
  %s4 = inlined_call_operand.hbm [shape: s8[128,128], index: 4, kind: input, shape index: {}]
  %s5 = inlined_call_operand.vmem [shape: f32[1,128], index: 5, kind: input, shape index: {}]
  %s6 = inlined_call_operand.vmem [shape: f32[1,128], index: 6, kind: input, shape index: {}]
  %s7 = inlined_call_operand.hbm [shape: s8[128,128], index: 7, kind: input, shape index: {}]
  %s8 = inlined_call_operand.vmem [shape: f32[1,128], index: 8, kind: input, shape index: {}]
  %s9 = inlined_call_operand.hbm [shape: f32[1,128], index: 9, kind: input, shape index: {}]
  %s10 = inlined_call_operand.vmem [shape: s8[128,128], index: 10, kind: input, shape index: {}]
  %s11 = inlined_call_operand.vmem [shape: f32[1,128], index: 11, kind: input, shape index: {}]
  %s12 = inlined_call_operand.vmem [shape: f32[1,128], index: 12, kind: input, shape index: {}]
  %s13 = inlined_call_operand.hbm [shape: s8[128,128], index: 13, kind: input, shape index: {}]
  %s14 = inlined_call_operand.vmem [shape: f32[1,128], index: 14, kind: input, shape index: {}]
  %s15 = inlined_call_operand.vmem [shape: f32[1,128], index: 15, kind: input, shape index: {}]
  %s16 = inlined_call_operand.hbm [shape: f32[16,128], index: 16, kind: output, shape index: {}]
  %s17 = sld [smem:[#allocation0]]
  $region98: #{tpu_custom_call.1} parent=0
    _
  %s19 = ssub.s32 1, %s17
  %s20 = scalar_select 0, %s19, %s17
  $region1: #{tpu_custom_call.1} parent=0
    #allocation2 [shape = 'u8[4096]{0}', space=vmem, size = 0x1000, scoped, tag = 'input window, operand 0, single buffered']
    #allocation3 [shape = 's32[1]{0}', space=sflag, size = 0x4, scoped, tag = 'scoped memory for tpu_custom_call.1']
    #allocation4 [shape = 's32[1]{0}', space=sflag, size = 0x4, scoped, tag = 'scoped memory for tpu_custom_call.1']
    #allocation5 [shape = 'u8[16384]{0}', space=vmem, size = 0x4000, scoped, tag = 'input window, operand 1, single buffered']
    #allocation6 [shape = 's32[1]{0}', space=sflag, size = 0x4, scoped, tag = 'scoped memory for tpu_custom_call.1']
    #allocation7 [shape = 'u8[16384]{0}', space=vmem, size = 0x4000, scoped, tag = 'input window, operand 4, single buffered']
    #allocation8 [shape = 'u8[16384]{0}', space=vmem, size = 0x4000, scoped, tag = 'input window, operand 7, single buffered']
    #allocation9 [shape = 's32[1]{0}', space=sflag, size = 0x4, scoped, tag = 'scoped memory for tpu_custom_call.1']
    #allocation10 [shape = 'u8[512]{0}', space=vmem, size = 0x400, scoped, tag = 'input window, operand 9, single buffered']
    #allocation11 [shape = 'u8[16384]{0}', space=vmem, size = 0x4000, scoped, tag = 'input window, operand 13, single buffered']
    #allocation12 [shape = 's32[1]{0}', space=sflag, size = 0x4, scoped, tag = 'scoped memory for tpu_custom_call.1']
    #allocation13 [shape = 'u8[8192]{0}', space=vmem, size = 0x2000, scoped, tag = 'output window, operand 0, single buffered']
    %21 = vsyncpa [#allocation3], 0
    %22 = vsyncpa [#allocation6], 0
    %23 = vsyncpa [#allocation9], 0
    %24 = vsyncpa [#allocation12], 0
    %25 = vsyncpa [#allocation4], 0
    // Predicated region
    $region2: #{tpu_custom_call.1} parent=1 // pred_check
      _
    $region3: #{tpu_custom_call.1} parent=1 // pred_check_branch
      %27 = sbr.rel (0) target = $region5
    $region4: #{tpu_custom_call.1} parent=1 // pred_region
      %s29 = ssub.s32 128, 128
      %30 = vsyncadd [#allocation3], %s29
      %s31 = sshll.u32 [#allocation2], 4
      %s32 = int_to_ptr.vmem [resolvable:$true] %s31
      %37 = dma.hbm_to_vmem [thread:$0]  %s0, 128, %s32, [#allocation3], 64, 64, 4
    $region5: #{tpu_custom_call.1} parent=1 // pred_fallthru
      _
    // Predicated region
    $region6: #{tpu_custom_call.1} parent=1 // pred_check
      _
    $region7: #{tpu_custom_call.1} parent=1 // pred_check_branch
      %39 = sbr.rel (0) target = $region9
    $region8: #{tpu_custom_call.1} parent=1 // pred_region
      %s41 = ssub.s32 512, 512
      %42 = vsyncadd [#allocation6], %s41
      %s43 = sshll.u32 [#allocation5], 4
      %s44 = int_to_ptr.vmem [resolvable:$true] %s43
      %49 = dma.hbm_to_vmem [thread:$0]  %s1, 512, %s44, [#allocation6], 128, 128, 8
    $region9: #{tpu_custom_call.1} parent=1 // pred_fallthru
      _
    // Predicated region
    $region10: #{tpu_custom_call.1} parent=1 // pred_check
      _
    $region11: #{tpu_custom_call.1} parent=1 // pred_check_branch
      %51 = sbr.rel (0) target = $region13
    $region12: #{tpu_custom_call.1} parent=1 // pred_region
      _
    $region13: #{tpu_custom_call.1} parent=1 // pred_fallthru
      _
    // Predicated region
    $region14: #{tpu_custom_call.1} parent=1 // pred_check
      _
    $region15: #{tpu_custom_call.1} parent=1 // pred_check_branch
      %53 = sbr.rel (0) target = $region17
    $region16: #{tpu_custom_call.1} parent=1 // pred_region
      _
    $region17: #{tpu_custom_call.1} parent=1 // pred_fallthru
      _
    // Predicated region
    $region18: #{tpu_custom_call.1} parent=1 // pred_check
      _
    $region19: #{tpu_custom_call.1} parent=1 // pred_check_branch
      %55 = sbr.rel (0) target = $region21
    $region20: #{tpu_custom_call.1} parent=1 // pred_region
      %s57 = ssub.s32 512, 512
      %58 = vsyncadd [#allocation6], %s57
      %s59 = sshll.u32 [#allocation7], 4
      %s60 = int_to_ptr.vmem [resolvable:$true] %s59
      %65 = dma.hbm_to_vmem [thread:$0]  %s4, 512, %s60, [#allocation6], 128, 128, 8
    $region21: #{tpu_custom_call.1} parent=1 // pred_fallthru
      _
    // Predicated region
    $region22: #{tpu_custom_call.1} parent=1 // pred_check
      _
    $region23: #{tpu_custom_call.1} parent=1 // pred_check_branch
      %67 = sbr.rel (0) target = $region25
    $region24: #{tpu_custom_call.1} parent=1 // pred_region
      _
    $region25: #{tpu_custom_call.1} parent=1 // pred_fallthru
      _
    // Predicated region
    $region26: #{tpu_custom_call.1} parent=1 // pred_check
      _
    $region27: #{tpu_custom_call.1} parent=1 // pred_check_branch
      %69 = sbr.rel (0) target = $region29
    $region28: #{tpu_custom_call.1} parent=1 // pred_region
      _
    $region29: #{tpu_custom_call.1} parent=1 // pred_fallthru
      _
    // Predicated region
    $region30: #{tpu_custom_call.1} parent=1 // pred_check
      _
    $region31: #{tpu_custom_call.1} parent=1 // pred_check_branch
      %71 = sbr.rel (0) target = $region33
    $region32: #{tpu_custom_call.1} parent=1 // pred_region
      %s73 = ssub.s32 512, 512
      %74 = vsyncadd [#allocation9], %s73
      %s75 = sshll.u32 [#allocation8], 4
      %s76 = int_to_ptr.vmem [resolvable:$true] %s75
      %81 = dma.hbm_to_vmem [thread:$0]  %s7, 512, %s76, [#allocation9], 128, 128, 8
    $region33: #{tpu_custom_call.1} parent=1 // pred_fallthru
      _
    // Predicated region
    $region34: #{tpu_custom_call.1} parent=1 // pred_check
      _
    $region35: #{tpu_custom_call.1} parent=1 // pred_check_branch
      %83 = sbr.rel (0) target = $region37
    $region36: #{tpu_custom_call.1} parent=1 // pred_region
      _
    $region37: #{tpu_custom_call.1} parent=1 // pred_fallthru
      _
    // Predicated region
    $region38: #{tpu_custom_call.1} parent=1 // pred_check
      _
    $region39: #{tpu_custom_call.1} parent=1 // pred_check_branch
      %85 = sbr.rel (0) target = $region41
    $region40: #{tpu_custom_call.1} parent=1 // pred_region
      %s87 = ssub.s32 16, 16
      %88 = vsyncadd [#allocation9], %s87
      %s90 = sshll.u32 [#allocation10], 4
      %s91 = int_to_ptr.vmem [resolvable:$true] %s90
      %93 = dma.hbm_to_vmem [thread:$0]  %s9, 16, %s91, [#allocation9]
    $region41: #{tpu_custom_call.1} parent=1 // pred_fallthru
      _
    // Predicated region
    $region42: #{tpu_custom_call.1} parent=1 // pred_check
      _
    $region43: #{tpu_custom_call.1} parent=1 // pred_check_branch
      %95 = sbr.rel (0) target = $region45
    $region44: #{tpu_custom_call.1} parent=1 // pred_region
      _
    $region45: #{tpu_custom_call.1} parent=1 // pred_fallthru
      _
    // Predicated region
    $region46: #{tpu_custom_call.1} parent=1 // pred_check
      _
    $region47: #{tpu_custom_call.1} parent=1 // pred_check_branch
      %97 = sbr.rel (0) target = $region49
    $region48: #{tpu_custom_call.1} parent=1 // pred_region
      _
    $region49: #{tpu_custom_call.1} parent=1 // pred_fallthru
      _
    // Predicated region
    $region50: #{tpu_custom_call.1} parent=1 // pred_check
      _
    $region51: #{tpu_custom_call.1} parent=1 // pred_check_branch
      %99 = sbr.rel (0) target = $region53
    $region52: #{tpu_custom_call.1} parent=1 // pred_region
      _
    $region53: #{tpu_custom_call.1} parent=1 // pred_fallthru
      _
    // Predicated region
    $region54: #{tpu_custom_call.1} parent=1 // pred_check
      _
    $region55: #{tpu_custom_call.1} parent=1 // pred_check_branch
      %101 = sbr.rel (0) target = $region57
    $region56: #{tpu_custom_call.1} parent=1 // pred_region
      %s103 = ssub.s32 512, 512
      %104 = vsyncadd [#allocation12], %s103
      %s105 = sshll.u32 [#allocation11], 4
      %s106 = int_to_ptr.vmem [resolvable:$true] %s105
      %111 = dma.hbm_to_vmem [thread:$0]  %s13, 512, %s106, [#allocation12], 128, 128, 8
    $region57: #{tpu_custom_call.1} parent=1 // pred_fallthru
      _
    // Predicated region
    $region58: #{tpu_custom_call.1} parent=1 // pred_check
      _
    $region59: #{tpu_custom_call.1} parent=1 // pred_check_branch
      %113 = sbr.rel (0) target = $region61
    $region60: #{tpu_custom_call.1} parent=1 // pred_region
      _
    $region61: #{tpu_custom_call.1} parent=1 // pred_fallthru
      _
    // Predicated region
    $region62: #{tpu_custom_call.1} parent=1 // pred_check
      _
    $region63: #{tpu_custom_call.1} parent=1 // pred_check_branch
      %115 = sbr.rel (0) target = $region65
    $region64: #{tpu_custom_call.1} parent=1 // pred_region
      _
    $region65: #{tpu_custom_call.1} parent=1 // pred_fallthru
      _
    // Predicated region
    $region66: #{tpu_custom_call.1} parent=1 // pred_check
      _
    $region67: #{tpu_custom_call.1} parent=1 // pred_check_branch
      %117 = sbr.rel (0) target = $region69
    $region68: #{tpu_custom_call.1} parent=1 // pred_region
      %118 = dma.done [#allocation3], 128
    $region69: #{tpu_custom_call.1} parent=1 // pred_fallthru
      _
    // Predicated region
    $region70: #{tpu_custom_call.1} parent=1 // pred_check
      _
    $region71: #{tpu_custom_call.1} parent=1 // pred_check_branch
      %120 = sbr.rel (0) target = $region73
    $region72: #{tpu_custom_call.1} parent=1 // pred_region
      %121 = dma.done [#allocation6], 512
    $region73: #{tpu_custom_call.1} parent=1 // pred_fallthru
      _
    // Predicated region
    $region74: #{tpu_custom_call.1} parent=1 // pred_check
      _
    $region75: #{tpu_custom_call.1} parent=1 // pred_check_branch
      %123 = sbr.rel (0) target = $region77
    $region76: #{tpu_custom_call.1} parent=1 // pred_region
      %124 = dma.done [#allocation6], 512
    $region77: #{tpu_custom_call.1} parent=1 // pred_fallthru
      _
    // Predicated region
    $region78: #{tpu_custom_call.1} parent=1 // pred_check
      _
    $region79: #{tpu_custom_call.1} parent=1 // pred_check_branch
      %126 = sbr.rel (0) target = $region81
    $region80: #{tpu_custom_call.1} parent=1 // pred_region
      %127 = dma.done [#allocation9], 512
    $region81: #{tpu_custom_call.1} parent=1 // pred_fallthru
      _
    // Predicated region
    $region82: #{tpu_custom_call.1} parent=1 // pred_check
      _
    $region83: #{tpu_custom_call.1} parent=1 // pred_check_branch
      %129 = sbr.rel (0) target = $region85
    $region84: #{tpu_custom_call.1} parent=1 // pred_region
      %130 = dma.done [#allocation9], 16
    $region85: #{tpu_custom_call.1} parent=1 // pred_fallthru
      _
    // Predicated region
    $region86: #{tpu_custom_call.1} parent=1 // pred_check
      _
    $region87: #{tpu_custom_call.1} parent=1 // pred_check_branch
      %132 = sbr.rel (0) target = $region89
    $region88: #{tpu_custom_call.1} parent=1 // pred_region
      %133 = dma.done [#allocation12], 512
    $region89: #{tpu_custom_call.1} parent=1 // pred_fallthru
      _
    %v135 = vld [vmem:[#allocation2] sm:$0xf]
    %v136 = vld [vmem:[#allocation2 + $0x4] sm:$0xf]
    %v137 = vunpack.c.l.bf16 %v135
    %v138 = vunpack.c.l.bf16 %v136
    %v139 = vmul.f32 %v137, %v137
    %v140 = vmul.f32 %v138, %v138
    %141 = vadd.xlane.f32.xlu0 %v139
    %v142 = vpop.xlane.xlu0 %141
    %143 = vadd.xlane.f32.xlu0 %v140
    %v144 = vpop.xlane.xlu0 %143
    %v145 = vmul.f32 %v142, 0.020833334
    %v146 = vmul.f32 %v144, 0.020833334
    %v147 = vadd.f32 %v145, 1e-08
    %v148 = vadd.f32 %v146, 1e-08
    %v149 = vrsqrt.pop %v147
    %v150 = vrsqrt.pop %v148
    %v151 = vmul.f32 %v137, %v149
    %v152 = vmul.f32 %v138, %v150
    %v153 = vld [vmem:[%s3] sm:$0x1]
    %v155 = vlaneseq
    %v156 = vshrl.u32 %v155, 7
    %v157 = vsub.s32 0, %v156
    %v158 = vrot.slane %v153, %v157
    %v160 = vmul.f32 %v151, %v158
    %v161 = vmul.f32 %v152, %v158
    %v162 = vpack.c.bf16 %v161, %v160
    %v163 = vld [vmem:[#allocation5] sm:$0xff]
    %v164 = vld [vmem:[#allocation5 + $0x8] sm:$0xff]
    %v165 = vld [vmem:[#allocation5 + $0x10] sm:$0xff]
    %v166 = vld [vmem:[#allocation5 + $0x18] sm:$0xff]
    %v167 = vunpack.c.l.s8.bf16 %v163
    %v168 = vunpack.c.h.s8.bf16 %v163
    %v169 = vunpack.c.l.s8.bf16 %v164
    %v170 = vunpack.c.h.s8.bf16 %v164
    %v171 = vunpack.c.l.s8.bf16 %v165
    %v172 = vunpack.c.h.s8.bf16 %v165
    %v173 = vunpack.c.l.s8.bf16 %v166
    %v174 = vunpack.c.h.s8.bf16 %v166
    %v175 = vld [vmem:[%s2] sm:$0x1]
    %v177 = vlaneseq
    %v178 = vshrl.u32 %v177, 7
    %v179 = vsub.s32 0, %v178
    %v180 = vrot.slane %v175, %v179
    %182 = vmatprep.subr.bf16.mxu0 0
    %183 = vmatpush1.bf16.msra.mxu0 %v167
    %184 = vmatprep.subr.bf16.mxu0 0
    %185 = vmatpush1.bf16.msra.mxu0 %v168
    %186 = vmatprep.subr.bf16.mxu0 0
    %187 = vmatpush1.bf16.msra.mxu0 %v169
    %188 = vmatprep.subr.bf16.mxu0 0
    %189 = vmatpush1.bf16.msra.mxu0 %v170
    %190 = vmatprep.subr.bf16.mxu0 0
    %191 = vmatpush1.bf16.msra.mxu0 %v171
    %192 = vmatprep.subr.bf16.mxu0 0
    %193 = vmatpush1.bf16.msra.mxu0 %v172
    %194 = vmatprep.subr.bf16.mxu0 0
    %195 = vmatpush1.bf16.msra.mxu0 %v173
    %196 = vmatprep.subr.bf16.mxu0 0
    %197 = vmatpush1.bf16.msra.mxu0 %v174
    %198 = vmatprep.subr.bf16.mxu0 0
    %199 = vmatpush1.bf16.msra.mxu0 0
    %200 = vmatprep.subr.bf16.mxu0 0
    %201 = vmatpush1.bf16.msra.mxu0 0
    %202 = vmatprep.subr.bf16.mxu0 0
    %203 = vmatpush1.bf16.msra.mxu0 0
    %204 = vmatprep.subr.bf16.mxu0 0
    %205 = vmatpush1.bf16.msra.mxu0 0
    %206 = vmatprep.subr.bf16.mxu0 0
    %207 = vmatpush1.bf16.msra.mxu0 0
    %208 = vmatprep.subr.bf16.mxu0 0
    %209 = vmatpush1.bf16.msra.mxu0 0
    %210 = vmatprep.subr.bf16.mxu0 0
    %211 = vmatpush1.bf16.msra.mxu0 0
    %212 = vmatprep.subr.bf16.mxu0 0
    %213 = vmatpush1.bf16.msra.mxu0 0
    %214 = vmatprep.mubr.bf16.mxu0 0
    %215 = vmatmul.mubr.bf16.gmra.mrb[0].mxu0 %v162
    %v216 = vpop.f32.mrb[0].mxu0
    %v217 = vadd.f32 %v180, %v216
    %v218 = vpop.f32.mrb[0].mxu0
    %v219 = vpop.f32.mrb[0].mxu0
    %v220 = vadd.f32 %v180, %v219
    %v221 = vpop.f32.mrb[0].mxu0
    %222 = vdwg.mxu0
    %v223 = vmul.f32 %v217, 0.5
    %v224 = vmul.f32 %v220, 0.5
    %v225 = vmul.f32 %v217, 0.70710677
    %v226 = vmul.f32 %v220, 0.70710677
    %v227 = verf.f32.pop %v225
    %v228 = verf.f32.pop %v226
    %v229 = vadd.f32 %v227, 1.0
    %v230 = vadd.f32 %v228, 1.0
    %v231 = vmul.f32 %v223, %v229
    %v232 = vmul.f32 %v224, %v230
    %v233 = vmul.f32 %v231, %v231
    %v234 = vmul.f32 %v232, %v232
    %235 = vadd.xlane.f32.xlu0 %v233
    %v236 = vpop.xlane.xlu0 %235
    %237 = vadd.xlane.f32.xlu0 %v234
    %v238 = vpop.xlane.xlu0 %237
    %v239 = vmul.f32 %v236, 0.03125
    %v240 = vmul.f32 %v238, 0.03125
    %v241 = vadd.f32 %v239, 1e-08
    %v242 = vadd.f32 %v240, 1e-08
    %v243 = vrsqrt.pop %v241
    %v244 = vrsqrt.pop %v242
    %v245 = vmul.f32 %v231, %v243
    %v246 = vmul.f32 %v232, %v244
    %v247 = vld [vmem:[%s6] sm:$0x1]
    %v249 = vlaneseq
    %v250 = vshrl.u32 %v249, 7
    %v251 = vsub.s32 0, %v250
    %v252 = vrot.slane %v247, %v251
    %v254 = vmul.f32 %v245, %v252
    %v255 = vmul.f32 %v246, %v252
    %v256 = vpack.c.bf16 %v255, %v254
    %v257 = vld [vmem:[#allocation7] sm:$0xff]
    %v258 = vld [vmem:[#allocation7 + $0x8] sm:$0xff]
    %v259 = vld [vmem:[#allocation7 + $0x10] sm:$0xff]
    %v260 = vld [vmem:[#allocation7 + $0x18] sm:$0xff]
    %v261 = vunpack.c.l.s8.bf16 %v257
    %v262 = vunpack.c.h.s8.bf16 %v257
    %v263 = vunpack.c.l.s8.bf16 %v258
    %v264 = vunpack.c.h.s8.bf16 %v258
    %v265 = vunpack.c.l.s8.bf16 %v259
    %v266 = vunpack.c.h.s8.bf16 %v259
    %v267 = vunpack.c.l.s8.bf16 %v260
    %v268 = vunpack.c.h.s8.bf16 %v260
    %v269 = vld [vmem:[%s5] sm:$0x1]
    %v271 = vlaneseq
    %v272 = vshrl.u32 %v271, 7
    %v273 = vsub.s32 0, %v272
    %v274 = vrot.slane %v269, %v273
    %276 = vmatprep.subr.bf16.mxu0 0
    %277 = vmatpush1.bf16.msra.mxu0 %v261
    %278 = vmatprep.subr.bf16.mxu0 0
    %279 = vmatpush1.bf16.msra.mxu0 %v262
    %280 = vmatprep.subr.bf16.mxu0 0
    %281 = vmatpush1.bf16.msra.mxu0 %v263
    %282 = vmatprep.subr.bf16.mxu0 0
    %283 = vmatpush1.bf16.msra.mxu0 %v264
    %284 = vmatprep.subr.bf16.mxu0 0
    %285 = vmatpush1.bf16.msra.mxu0 %v265
    %286 = vmatprep.subr.bf16.mxu0 0
    %287 = vmatpush1.bf16.msra.mxu0 %v266
    %288 = vmatprep.subr.bf16.mxu0 0
    %289 = vmatpush1.bf16.msra.mxu0 %v267
    %290 = vmatprep.subr.bf16.mxu0 0
    %291 = vmatpush1.bf16.msra.mxu0 %v268
    %292 = vmatprep.subr.bf16.mxu0 0
    %293 = vmatpush1.bf16.msra.mxu0 0
    %294 = vmatprep.subr.bf16.mxu0 0
    %295 = vmatpush1.bf16.msra.mxu0 0
    %296 = vmatprep.subr.bf16.mxu0 0
    %297 = vmatpush1.bf16.msra.mxu0 0
    %298 = vmatprep.subr.bf16.mxu0 0
    %299 = vmatpush1.bf16.msra.mxu0 0
    %300 = vmatprep.subr.bf16.mxu0 0
    %301 = vmatpush1.bf16.msra.mxu0 0
    %302 = vmatprep.subr.bf16.mxu0 0
    %303 = vmatpush1.bf16.msra.mxu0 0
    %304 = vmatprep.subr.bf16.mxu0 0
    %305 = vmatpush1.bf16.msra.mxu0 0
    %306 = vmatprep.subr.bf16.mxu0 0
    %307 = vmatpush1.bf16.msra.mxu0 0
    %308 = vmatprep.mubr.bf16.mxu0 0
    %309 = vmatmul.mubr.bf16.gmra.mrb[0].mxu0 %v256
    %v310 = vpop.f32.mrb[0].mxu0
    %v311 = vadd.f32 %v274, %v310
    %v312 = vpop.f32.mrb[0].mxu0
    %v313 = vpop.f32.mrb[0].mxu0
    %v314 = vadd.f32 %v274, %v313
    %v315 = vpop.f32.mrb[0].mxu0
    %316 = vdwg.mxu0
    %v317 = vmul.f32 %v311, 0.5
    %v318 = vmul.f32 %v314, 0.5
    %v319 = vmul.f32 %v311, 0.70710677
    %v320 = vmul.f32 %v314, 0.70710677
    %v321 = verf.f32.pop %v319
    %v322 = verf.f32.pop %v320
    %v323 = vadd.f32 %v321, 1.0
    %v324 = vadd.f32 %v322, 1.0
    %v325 = vmul.f32 %v317, %v323
    %v326 = vmul.f32 %v318, %v324
    %v327 = vmul.f32 %v325, %v325
    %v328 = vmul.f32 %v326, %v326
    %329 = vadd.xlane.f32.xlu0 %v327
    %v330 = vpop.xlane.xlu0 %329
    %331 = vadd.xlane.f32.xlu0 %v328
    %v332 = vpop.xlane.xlu0 %331
    %v333 = vmul.f32 %v330, 0.03125
    %v334 = vmul.f32 %v332, 0.03125
    %v335 = vadd.f32 %v333, 1e-08
    %v336 = vadd.f32 %v334, 1e-08
    %v337 = vrsqrt.pop %v335
    %v338 = vrsqrt.pop %v336
    %v339 = vmul.f32 %v325, %v337
    %v340 = vmul.f32 %v326, %v338
    %v341 = vld [vmem:[#allocation10] sm:$0x1]
    %v343 = vlaneseq
    %v344 = vshrl.u32 %v343, 7
    %v345 = vsub.s32 0, %v344
    %v346 = vrot.slane %v341, %v345
    %v348 = vmul.f32 %v339, %v346
    %v349 = vmul.f32 %v340, %v346
    %v350 = vpack.c.bf16 %v349, %v348
    %v351 = vld [vmem:[#allocation8] sm:$0xff]
    %v352 = vld [vmem:[#allocation8 + $0x8] sm:$0xff]
    %v353 = vld [vmem:[#allocation8 + $0x10] sm:$0xff]
    %v354 = vld [vmem:[#allocation8 + $0x18] sm:$0xff]
    %v355 = vunpack.c.l.s8.bf16 %v351
    %v356 = vunpack.c.h.s8.bf16 %v351
    %v357 = vunpack.c.l.s8.bf16 %v352
    %v358 = vunpack.c.h.s8.bf16 %v352
    %v359 = vunpack.c.l.s8.bf16 %v353
    %v360 = vunpack.c.h.s8.bf16 %v353
    %v361 = vunpack.c.l.s8.bf16 %v354
    %v362 = vunpack.c.h.s8.bf16 %v354
    %v363 = vld [vmem:[%s8] sm:$0x1]
    %v365 = vlaneseq
    %v366 = vshrl.u32 %v365, 7
    %v367 = vsub.s32 0, %v366
    %v368 = vrot.slane %v363, %v367
    %370 = vmatprep.subr.bf16.mxu0 0
    %371 = vmatpush1.bf16.msra.mxu0 %v355
    %372 = vmatprep.subr.bf16.mxu0 0
    %373 = vmatpush1.bf16.msra.mxu0 %v356
    %374 = vmatprep.subr.bf16.mxu0 0
    %375 = vmatpush1.bf16.msra.mxu0 %v357
    %376 = vmatprep.subr.bf16.mxu0 0
    %377 = vmatpush1.bf16.msra.mxu0 %v358
    %378 = vmatprep.subr.bf16.mxu0 0
    %379 = vmatpush1.bf16.msra.mxu0 %v359
    %380 = vmatprep.subr.bf16.mxu0 0
    %381 = vmatpush1.bf16.msra.mxu0 %v360
    %382 = vmatprep.subr.bf16.mxu0 0
    %383 = vmatpush1.bf16.msra.mxu0 %v361
    %384 = vmatprep.subr.bf16.mxu0 0
    %385 = vmatpush1.bf16.msra.mxu0 %v362
    %386 = vmatprep.subr.bf16.mxu0 0
    %387 = vmatpush1.bf16.msra.mxu0 0
    %388 = vmatprep.subr.bf16.mxu0 0
    %389 = vmatpush1.bf16.msra.mxu0 0
    %390 = vmatprep.subr.bf16.mxu0 0
    %391 = vmatpush1.bf16.msra.mxu0 0
    %392 = vmatprep.subr.bf16.mxu0 0
    %393 = vmatpush1.bf16.msra.mxu0 0
    %394 = vmatprep.subr.bf16.mxu0 0
    %395 = vmatpush1.bf16.msra.mxu0 0
    %396 = vmatprep.subr.bf16.mxu0 0
    %397 = vmatpush1.bf16.msra.mxu0 0
    %398 = vmatprep.subr.bf16.mxu0 0
    %399 = vmatpush1.bf16.msra.mxu0 0
    %400 = vmatprep.subr.bf16.mxu0 0
    %401 = vmatpush1.bf16.msra.mxu0 0
    %402 = vmatprep.mubr.bf16.mxu0 0
    %403 = vmatmul.mubr.bf16.gmra.mrb[0].mxu0 %v350
    %v404 = vpop.f32.mrb[0].mxu0
    %v405 = vadd.f32 %v368, %v404
    %v406 = vpop.f32.mrb[0].mxu0
    %v407 = vpop.f32.mrb[0].mxu0
    %v408 = vadd.f32 %v368, %v407
    %v409 = vpop.f32.mrb[0].mxu0
    %410 = vdwg.mxu0
    %v411 = vmul.f32 %v405, 0.5
    %v412 = vmul.f32 %v408, 0.5
    %v413 = vmul.f32 %v405, 0.70710677
    %v414 = vmul.f32 %v408, 0.70710677
    %v415 = verf.f32.pop %v413
    %v416 = verf.f32.pop %v414
    %v417 = vadd.f32 %v415, 1.0
    %v418 = vadd.f32 %v416, 1.0
    %v419 = vmul.f32 %v411, %v417
    %v420 = vmul.f32 %v412, %v418
    %v421 = vmul.f32 %v419, %v419
    %v422 = vmul.f32 %v420, %v420
    %423 = vadd.xlane.f32.xlu0 %v421
    %v424 = vpop.xlane.xlu0 %423
    %425 = vadd.xlane.f32.xlu0 %v422
    %v426 = vpop.xlane.xlu0 %425
    %v427 = vmul.f32 %v424, 0.03125
    %v428 = vmul.f32 %v426, 0.03125
    %v429 = vadd.f32 %v427, 1e-08
    %v430 = vadd.f32 %v428, 1e-08
    %v431 = vrsqrt.pop %v429
    %v432 = vrsqrt.pop %v430
    %v433 = vmul.f32 %v419, %v431
    %v434 = vmul.f32 %v420, %v432
    %v435 = vld [vmem:[%s12] sm:$0x1]
    %v437 = vlaneseq
    %v438 = vshrl.u32 %v437, 7
    %v439 = vsub.s32 0, %v438
    %v440 = vrot.slane %v435, %v439
    %v442 = vmul.f32 %v433, %v440
    %v443 = vmul.f32 %v434, %v440
    %v444 = vpack.c.bf16 %v443, %v442
    %v445 = vld [vmem:[%s10] sm:$0xff]
    %v446 = vld [vmem:[%s10 + $0x8] sm:$0xff]
    %v447 = vld [vmem:[%s10 + $0x10] sm:$0xff]
    %v448 = vld [vmem:[%s10 + $0x18] sm:$0xff]
    %v449 = vunpack.c.l.s8.bf16 %v445
    %v450 = vunpack.c.h.s8.bf16 %v445
    %v451 = vunpack.c.l.s8.bf16 %v446
    %v452 = vunpack.c.h.s8.bf16 %v446
    %v453 = vunpack.c.l.s8.bf16 %v447
    %v454 = vunpack.c.h.s8.bf16 %v447
    %v455 = vunpack.c.l.s8.bf16 %v448
    %v456 = vunpack.c.h.s8.bf16 %v448
    %v457 = vld [vmem:[%s11] sm:$0x1]
    %v459 = vlaneseq
    %v460 = vshrl.u32 %v459, 7
    %v461 = vsub.s32 0, %v460
    %v462 = vrot.slane %v457, %v461
    %464 = vmatprep.subr.bf16.mxu0 0
    %465 = vmatpush1.bf16.msra.mxu0 %v449
    %466 = vmatprep.subr.bf16.mxu0 0
    %467 = vmatpush1.bf16.msra.mxu0 %v450
    %468 = vmatprep.subr.bf16.mxu0 0
    %469 = vmatpush1.bf16.msra.mxu0 %v451
    %470 = vmatprep.subr.bf16.mxu0 0
    %471 = vmatpush1.bf16.msra.mxu0 %v452
    %472 = vmatprep.subr.bf16.mxu0 0
    %473 = vmatpush1.bf16.msra.mxu0 %v453
    %474 = vmatprep.subr.bf16.mxu0 0
    %475 = vmatpush1.bf16.msra.mxu0 %v454
    %476 = vmatprep.subr.bf16.mxu0 0
    %477 = vmatpush1.bf16.msra.mxu0 %v455
    %478 = vmatprep.subr.bf16.mxu0 0
    %479 = vmatpush1.bf16.msra.mxu0 %v456
    %480 = vmatprep.subr.bf16.mxu0 0
    %481 = vmatpush1.bf16.msra.mxu0 0
    %482 = vmatprep.subr.bf16.mxu0 0
    %483 = vmatpush1.bf16.msra.mxu0 0
    %484 = vmatprep.subr.bf16.mxu0 0
    %485 = vmatpush1.bf16.msra.mxu0 0
    %486 = vmatprep.subr.bf16.mxu0 0
    %487 = vmatpush1.bf16.msra.mxu0 0
    %488 = vmatprep.subr.bf16.mxu0 0
    %489 = vmatpush1.bf16.msra.mxu0 0
    %490 = vmatprep.subr.bf16.mxu0 0
    %491 = vmatpush1.bf16.msra.mxu0 0
    %492 = vmatprep.subr.bf16.mxu0 0
    %493 = vmatpush1.bf16.msra.mxu0 0
    %494 = vmatprep.subr.bf16.mxu0 0
    %495 = vmatpush1.bf16.msra.mxu0 0
    %496 = vmatprep.mubr.bf16.mxu0 0
    %497 = vmatmul.mubr.bf16.gmra.mrb[0].mxu0 %v444
    %v498 = vpop.f32.mrb[0].mxu0
    %v499 = vadd.f32 %v462, %v498
    %v500 = vpop.f32.mrb[0].mxu0
    %v501 = vpop.f32.mrb[0].mxu0
    %v502 = vadd.f32 %v462, %v501
    %v503 = vpop.f32.mrb[0].mxu0
    %504 = vdwg.mxu0
    %v505 = vmul.f32 %v499, 0.5
    %v506 = vmul.f32 %v502, 0.5
    %v507 = vmul.f32 %v499, 0.70710677
    %v508 = vmul.f32 %v502, 0.70710677
    %v509 = verf.f32.pop %v507
    %v510 = verf.f32.pop %v508
    %v511 = vadd.f32 %v509, 1.0
    %v512 = vadd.f32 %v510, 1.0
    %v513 = vmul.f32 %v505, %v511
    %v514 = vmul.f32 %v506, %v512
    %v515 = vmul.f32 %v513, %v513
    %v516 = vmul.f32 %v514, %v514
    %517 = vadd.xlane.f32.xlu0 %v515
    %v518 = vpop.xlane.xlu0 %517
    %519 = vadd.xlane.f32.xlu0 %v516
    %v520 = vpop.xlane.xlu0 %519
    %v521 = vmul.f32 %v518, 0.03125
    %v522 = vmul.f32 %v520, 0.03125
    %v523 = vadd.f32 %v521, 1e-08
    %v524 = vadd.f32 %v522, 1e-08
    %v525 = vrsqrt.pop %v523
    %v526 = vrsqrt.pop %v524
    %v527 = vmul.f32 %v513, %v525
    %v528 = vmul.f32 %v514, %v526
    %v529 = vld [vmem:[%s15] sm:$0x1]
    %v531 = vlaneseq
    %v532 = vshrl.u32 %v531, 7
    %v533 = vsub.s32 0, %v532
    %v534 = vrot.slane %v529, %v533
    %v536 = vmul.f32 %v527, %v534
    %v537 = vmul.f32 %v528, %v534
    %v538 = vpack.c.bf16 %v537, %v536
    %v539 = vld [vmem:[#allocation11] sm:$0xff]
    %v540 = vld [vmem:[#allocation11 + $0x8] sm:$0xff]
    %v541 = vld [vmem:[#allocation11 + $0x10] sm:$0xff]
    %v542 = vld [vmem:[#allocation11 + $0x18] sm:$0xff]
    %v543 = vunpack.c.l.s8.bf16 %v539
    %v544 = vunpack.c.h.s8.bf16 %v539
    %v545 = vunpack.c.l.s8.bf16 %v540
    %v546 = vunpack.c.h.s8.bf16 %v540
    %v547 = vunpack.c.l.s8.bf16 %v541
    %v548 = vunpack.c.h.s8.bf16 %v541
    %v549 = vunpack.c.l.s8.bf16 %v542
    %v550 = vunpack.c.h.s8.bf16 %v542
    %v551 = vld [vmem:[%s14] sm:$0x1]
    %v553 = vlaneseq
    %v554 = vshrl.u32 %v553, 7
    %v555 = vsub.s32 0, %v554
    %v556 = vrot.slane %v551, %v555
    %558 = vmatprep.subr.bf16.mxu0 0
    %559 = vmatpush1.bf16.msra.mxu0 %v543
    %560 = vmatprep.subr.bf16.mxu0 0
    %561 = vmatpush1.bf16.msra.mxu0 %v544
    %562 = vmatprep.subr.bf16.mxu0 0
    %563 = vmatpush1.bf16.msra.mxu0 %v545
    %564 = vmatprep.subr.bf16.mxu0 0
    %565 = vmatpush1.bf16.msra.mxu0 %v546
    %566 = vmatprep.subr.bf16.mxu0 0
    %567 = vmatpush1.bf16.msra.mxu0 %v547
    %568 = vmatprep.subr.bf16.mxu0 0
    %569 = vmatpush1.bf16.msra.mxu0 %v548
    %570 = vmatprep.subr.bf16.mxu0 0
    %571 = vmatpush1.bf16.msra.mxu0 %v549
    %572 = vmatprep.subr.bf16.mxu0 0
    %573 = vmatpush1.bf16.msra.mxu0 %v550
    %574 = vmatprep.subr.bf16.mxu0 0
    %575 = vmatpush1.bf16.msra.mxu0 0
    %576 = vmatprep.subr.bf16.mxu0 0
    %577 = vmatpush1.bf16.msra.mxu0 0
    %578 = vmatprep.subr.bf16.mxu0 0
    %579 = vmatpush1.bf16.msra.mxu0 0
    %580 = vmatprep.subr.bf16.mxu0 0
    %581 = vmatpush1.bf16.msra.mxu0 0
    %582 = vmatprep.subr.bf16.mxu0 0
    %583 = vmatpush1.bf16.msra.mxu0 0
    %584 = vmatprep.subr.bf16.mxu0 0
    %585 = vmatpush1.bf16.msra.mxu0 0
    %586 = vmatprep.subr.bf16.mxu0 0
    %587 = vmatpush1.bf16.msra.mxu0 0
    %588 = vmatprep.subr.bf16.mxu0 0
    %589 = vmatpush1.bf16.msra.mxu0 0
    %590 = vmatprep.mubr.bf16.mxu0 0
    %591 = vmatmul.mubr.bf16.gmra.mrb[0].mxu0 %v538
    %v592 = vpop.f32.mrb[0].mxu0
    %v593 = vadd.f32 %v556, %v592
    %v594 = vpop.f32.mrb[0].mxu0
    %v595 = vpop.f32.mrb[0].mxu0
    %v596 = vadd.f32 %v556, %v595
    %v597 = vpop.f32.mrb[0].mxu0
    %598 = vdwg.mxu0
    %599 = vst [vmem:[#allocation13] sm:$0xff] %v593
    %600 = vst [vmem:[#allocation13 + $0x8] sm:$0xff] %v596
    // Predicated region
    $region90: #{tpu_custom_call.1} parent=1 // pred_check
      _
    $region91: #{tpu_custom_call.1} parent=1 // pred_check_branch
      %602 = sbr.rel (0) target = $region93
    $region92: #{tpu_custom_call.1} parent=1 // pred_region
      %s604 = ssub.s32 256, 256
      %605 = vsyncadd [#allocation4], %s604
      %s606 = sshll.u32 [#allocation13], 4
      %s607 = int_to_ptr.vmem [resolvable:$true] %s606
      %612 = dma.vmem_to_hbm [thread:$0]  %s607, 256, %s16, [#allocation4], 128, 128, 8
    $region93: #{tpu_custom_call.1} parent=1 // pred_fallthru
      _
    // Predicated region
    $region94: #{tpu_custom_call.1} parent=1 // pred_check
      _
    $region95: #{tpu_custom_call.1} parent=1 // pred_check_branch
      %614 = sbr.rel (0) target = $region97
    $region96: #{tpu_custom_call.1} parent=1 // pred_region
      %615 = dma.done [#allocation4], 256
    $region97: #{tpu_custom_call.1} parent=1 // pred_fallthru
      _
    %616 = vsyncpa [#allocation3], 1
    %617 = vsyncpa [#allocation6], 1
    %618 = vsyncpa [#allocation9], 1
    %619 = vsyncpa [#allocation12], 1
    %620 = vsyncpa [#allocation4], 1

</llo_original>
